<compile_context>
chip_gen: v6e
topology: v6e:2x2x1
jax: 0.10.0
libtpu: 0.0.40
codegen_flags: <defaults>
</compile_context>

<pallas_src>
import math
from functools import partial

import jax
import jax.numpy as jnp
from jax import lax
from jax.experimental import pallas as pl
from jax.experimental.pallas import tpu as pltpu

EPS = 1e-5
EXPANSION = 4
POOL_KS = 3

_VMEM_LIMIT = None


def _vmem_limit():
    # per-generation VMEM budget: ~3/4 of physical (v5e/v6e 128MiB -> 96MiB,
    # v7x 64MiB -> 48MiB), clamped to [32MiB, 100MiB].
    global _VMEM_LIMIT
    if _VMEM_LIMIT is None:
        cap = 64 * 1024 * 1024
        try:
            cap = int(pltpu.get_tpu_info().vmem_capacity_bytes)
        except Exception:
            pass
        _VMEM_LIMIT = max(32 * 1024 * 1024, min(cap * 3 // 4, 100 * 1024 * 1024))
    return _VMEM_LIMIT


def _cparams(sem):
    return pltpu.CompilerParams(dimension_semantics=sem,
                                vmem_limit_bytes=_vmem_limit())


def _cpad128(c):
    # pad a channel count to a multiple of 128 lanes when the overhead is small
    return c if c < 96 else ((c + 127) // 128) * 128


def _mish(x):
    # mish(x) = x * tanh(softplus(x)); one exp (EUP) + one approx reciprocal (EUP)
    t = jnp.exp(-jnp.abs(x))
    num = jnp.where(x >= 0, 1.0 + 2.0 * t, 2.0 * t + t * t)
    den = jnp.where(x >= 0, 1.0 + 2.0 * t + 2.0 * t * t, 2.0 + 2.0 * t + t * t)
    return x * num * pl.reciprocal(den, approx=True)


def _identity_affine(c):
    return (jnp.ones((1, 1, c), jnp.float32), jnp.zeros((1, 1, c), jnp.float32))


# ------------------------------ kernel helpers ------------------------------

def _fill_affine_padded(xp_ref, x_ref, s_ref, b_ref, pad, fill):
    # xp[pad:pad+L] = x * scale + shift  (BN of the producer fused here);
    # pad rows get `fill` (0 for conv/avg-pool, -inf for max-pool).
    L_in = x_ref.shape[1]
    c_in = x_ref.shape[2]
    if pad > 0:
        frow = jnp.full((pad, c_in), fill, xp_ref.dtype)
        xp_ref[0:pad, :] = frow
        xp_ref[pad + L_in:pad + L_in + pad, :] = frow
    xp_ref[pad:pad + L_in, :] = (x_ref[0].astype(jnp.float32) * s_ref[0]
                                 + b_ref[0]).astype(xp_ref.dtype)


def _conv_windows(xp_ref, w_ref, ks, stride, L_out):
    c_out = w_ref.shape[2]
    acc = jnp.zeros((L_out, c_out), jnp.float32)
    for k in range(ks):
        sl = pl.ds(k, L_out) if stride == 1 else pl.ds(k, L_out, stride)
        xs = xp_ref[sl, :]
        if xs.dtype != jnp.bfloat16:
            xs = xs.astype(jnp.bfloat16)
        acc = acc + jnp.dot(xs, w_ref[k], preferred_element_type=jnp.float32)
    return acc


def _write_stats(stat_ref, acc):
    # two rows only: row0 = sum, row1 = sum of squares (no zero-row padding)
    s1 = jnp.sum(acc, axis=0, keepdims=True)
    s2 = jnp.sum(acc * acc, axis=0, keepdims=True)
    stat_ref[0] = jnp.concatenate([s1, s2], axis=0)


# ------------------------------ Pallas kernels ------------------------------

def _conv_stats_kernel(x_ref, s_ref, b_ref, w_ref, z_ref, stat_ref, *scratch,
                       ks, stride, pad, act):
    # x_ref: (1, L_in, C_in) bf16 pending;  s/b: (1,1,C_in) f32 pending affine
    # w_ref: (ks, C_in, C_out) bf16;  z_ref: (1, L_out, C_out) bf16 (pre-BN)
    # stat_ref: (1, 2, C_out) f32
    L_out = z_ref.shape[1]
    if scratch:
        xp_ref = scratch[0]
        _fill_affine_padded(xp_ref, x_ref, s_ref, b_ref, pad, 0.0)
        acc = _conv_windows(xp_ref, w_ref, ks, stride, L_out)
    else:
        # 1x1 / stride-1 conv: no halo, no scratch copy at all
        xs = (x_ref[0].astype(jnp.float32) * s_ref[0]
              + b_ref[0]).astype(jnp.bfloat16)
        acc = jnp.dot(xs, w_ref[0], preferred_element_type=jnp.float32)
    if act:
        acc = _mish(acc)
    z_ref[0] = acc.astype(z_ref.dtype)
    _write_stats(stat_ref, acc)


def _conv_stats_masked_kernel(x_ref, s_ref, b_ref, w_ref, m_ref, z_ref,
                              stat_ref, xp_ref, *, ks, stride, pad):
    # packed block-diagonal conv for first_block: Mish only on conv channels
    # (m == 1); the avg-pool channels (m == 0) pass through un-activated.
    L_out = z_ref.shape[1]
    _fill_affine_padded(xp_ref, x_ref, s_ref, b_ref, pad, 0.0)
    acc = _conv_windows(xp_ref, w_ref, ks, stride, L_out)
    acc = jnp.where(m_ref[0] > 0.0, _mish(acc), acc)
    z_ref[0] = acc.astype(z_ref.dtype)
    _write_stats(stat_ref, acc)


def _conv_stats_add_kernel(xa_ref, sa_ref, ba_ref, xb_ref, sb_ref, bb_ref,
                           w_ref, z_ref, stat_ref, xp_ref, *,
                           ks, stride, pad, act):
    # hierarchical split (non-first blocks): conv( BN(a) + BN(b) )
    L_out = z_ref.shape[1]
    L_in = xa_ref.shape[1]
    c_in = xa_ref.shape[2]
    if pad > 0:
        frow = jnp.zeros((pad, c_in), xp_ref.dtype)
        xp_ref[0:pad, :] = frow
        xp_ref[pad + L_in:pad + L_in + pad, :] = frow
    xp_ref[pad:pad + L_in, :] = (
        xa_ref[0].astype(jnp.float32) * sa_ref[0] + ba_ref[0]
        + xb_ref[0].astype(jnp.float32) * sb_ref[0] + bb_ref[0]
    ).astype(xp_ref.dtype)
    acc = _conv_windows(xp_ref, w_ref, ks, stride, L_out)
    if act:
        acc = _mish(acc)
    z_ref[0] = acc.astype(z_ref.dtype)
    _write_stats(stat_ref, acc)


def _pool_kernel(x_ref, s_ref, b_ref, o_ref, xp_ref, *, ks, stride, pad, op):
    # pooling over the BN-applied input; ks shifted elementwise combines
    L_out = o_ref.shape[1]
    fill = -jnp.inf if op == "max" else 0.0
    _fill_affine_padded(xp_ref, x_ref, s_ref, b_ref, pad, fill)
    acc = None
    for k in range(ks):
        sl = pl.ds(k, L_out) if stride == 1 else pl.ds(k, L_out, stride)
        xs = xp_ref[sl, :]
        if acc is None:
            acc = xs
        elif op == "max":
            acc = jnp.maximum(acc, xs)
        else:
            acc = acc + xs
    if op == "avg":
        acc = acc * (1.0 / ks)  # count_include_pad=True
    o_ref[0] = acc.astype(o_ref.dtype)


def _affine_add_mish_kernel(za_ref, sa_ref, ba_ref, zb_ref, sb_ref, bb_ref,
                            o_ref):
    # block tail: BN(main) + BN(residual or identity) -> add -> Mish
    a = za_ref[0].astype(jnp.float32) * sa_ref[0] + ba_ref[0]
    b = zb_ref[0].astype(jnp.float32) * sb_ref[0] + bb_ref[0]
    o_ref[0] = _mish(a + b).astype(o_ref.dtype)


def _head_kernel(x_ref, s_ref, b_ref, w_ref, fb_ref, o_ref):
    # AdaptiveAvgPool1d(1) + Linear (lane-padded to 128 classes)
    n = pl.program_id(0)
    xa = x_ref[0].astype(jnp.float32) * s_ref[0] + b_ref[0]
    xm = jnp.mean(xa, axis=0, keepdims=True)                    # (1, C)
    y = jnp.dot(xm.astype(jnp.bfloat16), w_ref[...],
                preferred_element_type=jnp.float32) + fb_ref[...]
    o_ref[pl.ds(n, 1), :] = y


# ------------------------------ wrappers ------------------------------

def conv_bn_stats(t, p, stride, act, t2=None, mish_mask=None):
    """conv (+Mish) with the producer's BN fused at the input; returns a new
    pending triple (z_bf16, bn_scale, bn_shift)."""
    z, s, b = t
    N, L_in, c_in = z.shape
    w = p["w"]
    ks, _, c_out = w.shape
    pad = p["pad"]
    L_out = (L_in + 2 * pad - ks) // stride + 1

    spec_z = pl.BlockSpec((1, L_in, c_in), lambda n: (n, 0, 0))
    spec_ci = pl.BlockSpec((1, 1, c_in), lambda n: (0, 0, 0))
    spec_w = pl.BlockSpec((ks, c_in, c_out), lambda n: (0, 0, 0))
    spec_co = pl.BlockSpec((1, 1, c_out), lambda n: (0, 0, 0))

    out_specs = [pl.BlockSpec((1, L_out, c_out), lambda n: (n, 0, 0)),
                 pl.BlockSpec((1, 2, c_out), lambda n: (n, 0, 0))]
    out_shape = [jax.ShapeDtypeStruct((N, L_out, c_out), jnp.bfloat16),
                 jax.ShapeDtypeStruct((N, 2, c_out), jnp.float32)]

    use_scratch = not (ks == 1 and pad == 0 and stride == 1)
    xp_dtype = jnp.bfloat16 if stride == 1 else jnp.float32
    scratch = ([pltpu.VMEM((L_in + 2 * pad, c_in), xp_dtype)]
               if use_scratch else [])

    if t2 is not None:
        z2, s2, b2 = t2
        kern = partial(_conv_stats_add_kernel, ks=ks, stride=stride, pad=pad,
                       act=act)
        in_specs = [spec_z, spec_ci, spec_ci, spec_z, spec_ci, spec_ci, spec_w]
        args = (z, s, b, z2, s2, b2, w)
    elif mish_mask is not None:
        kern = partial(_conv_stats_masked_kernel, ks=ks, stride=stride, pad=pad)
        in_specs = [spec_z, spec_ci, spec_ci, spec_w, spec_co]
        args = (z, s, b, w, mish_mask)
    else:
        kern = partial(_conv_stats_kernel, ks=ks, stride=stride, pad=pad,
                       act=act)
        in_specs = [spec_z, spec_ci, spec_ci, spec_w]
        args = (z, s, b, w)

    zc, stats = pl.pallas_call(
        kern, grid=(N,), in_specs=in_specs, out_specs=out_specs,
        out_shape=out_shape, scratch_shapes=scratch,
        compiler_params=_cparams(("parallel",)))(*args)

    # training-mode batch statistics -> per-channel pending affine (tiny XLA)
    m_rows = N * L_out
    tot = jnp.sum(stats, axis=0)                                # (2, c_out)
    mean = tot[0] / m_rows
    var = jnp.maximum(tot[1] / m_rows - mean * mean, 0.0)
    bn_scale = p["gamma"] * lax.rsqrt(var + EPS)
    bn_shift = p["beta"] - mean * bn_scale
    return zc, bn_scale.reshape(1, 1, c_out), bn_shift.reshape(1, 1, c_out)


def pool1d(t, ks, stride, pad, op):
    z, s, b = t
    N, L_in, C = z.shape
    L_out = (L_in + 2 * pad - ks) // stride + 1
    out = pl.pallas_call(
        partial(_pool_kernel, ks=ks, stride=stride, pad=pad, op=op),
        grid=(N,),
        in_specs=[pl.BlockSpec((1, L_in, C), lambda n: (n, 0, 0)),
                  pl.BlockSpec((1, 1, C), lambda n: (0, 0, 0)),
                  pl.BlockSpec((1, 1, C), lambda n: (0, 0, 0))],
        out_specs=pl.BlockSpec((1, L_out, C), lambda n: (n, 0, 0)),
        out_shape=jax.ShapeDtypeStruct((N, L_out, C), jnp.bfloat16),
        scratch_shapes=[pltpu.VMEM((L_in + 2 * pad, C), jnp.float32)],
        compiler_params=_cparams(("parallel",)),
    )(z, s, b)
    one, zero = _identity_affine(C)
    return out, one, zero


def bn_add_mish_apply(za, sa, ba, zb, sb, bb):
    N, L, C = za.shape
    return pl.pallas_call(
        _affine_add_mish_kernel,
        grid=(N,),
        in_specs=[pl.BlockSpec((1, L, C), lambda n: (n, 0, 0)),
                  pl.BlockSpec((1, 1, C), lambda n: (0, 0, 0)),
                  pl.BlockSpec((1, 1, C), lambda n: (0, 0, 0)),
                  pl.BlockSpec((1, L, C), lambda n: (n, 0, 0)),
                  pl.BlockSpec((1, 1, C), lambda n: (0, 0, 0)),
                  pl.BlockSpec((1, 1, C), lambda n: (0, 0, 0))],
        out_specs=pl.BlockSpec((1, L, C), lambda n: (n, 0, 0)),
        out_shape=jax.ShapeDtypeStruct((N, L, C), jnp.bfloat16),
        compiler_params=_cparams(("parallel",)),
    )(za, sa, ba, zb, sb, bb)


def head_pallas(t, fc_w, fc_b):
    z, s, b = t
    N, L, C = z.shape
    npad = fc_w.shape[1]
    return pl.pallas_call(
        _head_kernel,
        grid=(N,),
        in_specs=[pl.BlockSpec((1, L, C), lambda n: (n, 0, 0)),
                  pl.BlockSpec((1, 1, C), lambda n: (0, 0, 0)),
                  pl.BlockSpec((1, 1, C), lambda n: (0, 0, 0)),
                  pl.BlockSpec((C, npad), lambda n: (0, 0)),
                  pl.BlockSpec((1, npad), lambda n: (0, 0))],
        out_specs=pl.BlockSpec((N, npad), lambda n: (0, 0)),   # resident output
        out_shape=jax.ShapeDtypeStruct((N, npad), jnp.float32),
        compiler_params=_cparams(("arbitrary",)),
    )(z, s, b, fc_w, fc_b.reshape(1, npad))


# ------------------------------ parameter init ------------------------------

def _init_conv_bn(key, c_in, c_out, ks, c_in_pad=None, c_out_pad=None):
    # kaiming_normal_(mode='fan_out', nonlinearity='relu'); BN weight=1, bias=0
    c_in_pad = c_in if c_in_pad is None else c_in_pad
    c_out_pad = c_out if c_out_pad is None else c_out_pad
    std = math.sqrt(2.0 / (c_out * ks))
    w = jax.random.normal(key, (ks, c_in, c_out), jnp.float32) * std
    w_full = jnp.zeros((ks, c_in_pad, c_out_pad), jnp.float32)
    w_full = w_full.at[:, :c_in, :c_out].set(w)
    gamma = jnp.zeros((c_out_pad,), jnp.float32).at[:c_out].set(1.0)
    beta = jnp.zeros((c_out_pad,), jnp.float32)
    return {"w": w_full.astype(jnp.bfloat16),
            "gamma": gamma, "beta": beta, "pad": ks // 2}


def _init_block(key, inplanes, planes, stride, base_width, scale, first_block):
    width = int(math.floor(planes * base_width / 64.0))
    ws = width * scale
    ws_pad = _cpad128(ws)
    keys = jax.random.split(key, scale + 2)
    need_ds = (stride != 1) or (inplanes != planes * EXPANSION)
    convs = [_init_conv_bn(keys[1 + i], width, width, 3)
             for i in range(scale - 1)]
    blk = {
        "width": width, "scale": scale, "stride": stride,
        "first_block": first_block, "ws": ws, "ws_pad": ws_pad,
        "conv1": _init_conv_bn(keys[0], inplanes, ws, 1, c_out_pad=ws_pad),
        "convs": convs,
        "conv3": _init_conv_bn(keys[scale], ws, planes * EXPANSION, 1,
                               c_in_pad=ws_pad),
        "downsample": (_init_conv_bn(keys[scale + 1], inplanes,
                                     planes * EXPANSION, 1)
                       if need_ds else None),
    }
    if first_block and scale > 1:
        # Packed block-diagonal weight: independent split 3x3 convs on the
        # diagonal, identity taps for the stage avg-pool of the last split
        # (its 1/ks goes into the pending scale), zero for pad channels.
        wbd = jnp.zeros((3, ws_pad, ws_pad), jnp.float32)
        for i in range(scale - 1):
            wi = convs[i]["w"].astype(jnp.float32)
            wbd = wbd.at[:, i * width:(i + 1) * width,
                         i * width:(i + 1) * width].set(wi)
        eye = jnp.eye(width, dtype=jnp.float32)
        for k in range(3):
            wbd = wbd.at[k, (scale - 1) * width:ws,
                         (scale - 1) * width:ws].set(eye)
        gamma_p = jnp.ones((ws_pad,), jnp.float32)
        beta_p = jnp.zeros((ws_pad,), jnp.float32)
        for i in range(scale - 1):
            gamma_p = gamma_p.at[i * width:(i + 1) * width].set(
                convs[i]["gamma"])
            beta_p = beta_p.at[i * width:(i + 1) * width].set(convs[i]["beta"])
        mask = jnp.zeros((ws_pad,), jnp.float32).at[:(scale - 1) * width].set(1.)
        blk["packed"] = {"w": wbd.astype(jnp.bfloat16), "gamma": gamma_p,
                         "beta": beta_p, "pad": 1, "mask": mask}
    return blk


def init_res2net(key, layers, c_in=3, num_classes=10, base_width=26, scale=4):
    counter = [0]

    def nk():
        counter[0] += 1
        return jax.random.fold_in(key, counter[0])

    params = {"scale": scale, "num_classes": num_classes}
    params["conv1"] = _init_conv_bn(nk(), c_in, 32, 3)
    params["conv2"] = _init_conv_bn(nk(), 32, 64, 3)
    params["conv3"] = _init_conv_bn(nk(), 64, 64, 3)

    inplanes = 64
    layer_params = []
    for planes, nblocks, stride in zip((64, 128, 256, 512), layers,
                                       (1, 2, 2, 2)):
        blocks = [_init_block(nk(), inplanes, planes, stride, base_width,
                              scale, first_block=True)]
        inplanes = planes * EXPANSION
        for _ in range(1, nblocks):
            blocks.append(_init_block(nk(), inplanes, planes, 1, base_width,
                                      scale, first_block=False))
        layer_params.append(blocks)
    params["layers"] = layer_params

    fan_in = 512 * EXPANSION
    bound = 1.0 / math.sqrt(fan_in)
    ncls_pad = _cpad128(max(num_classes, 96))          # lane-dense head output
    fc_w = jnp.zeros((fan_in, ncls_pad), jnp.float32)
    fc_w = fc_w.at[:, :num_classes].set(
        jax.random.uniform(nk(), (fan_in, num_classes), jnp.float32,
                           -bound, bound))
    fc_b = jnp.zeros((ncls_pad,), jnp.float32).at[:num_classes].set(
        jax.random.uniform(nk(), (num_classes,), jnp.float32, -bound, bound))
    params["fc_w"] = fc_w.astype(jnp.bfloat16)
    params["fc_b"] = fc_b
    return params


# ------------------------------ forward ------------------------------

def bottle2neck_forward(t, p):
    scale, width = p["scale"], p["width"]
    stride, first = p["stride"], p["first_block"]

    t1 = conv_bn_stats(t, p["conv1"], stride=1, act=True)     # C = ws_pad

    if first and scale > 1:
        # one packed block-diagonal conv = all split convs + stage avg-pool
        pk = p["packed"]
        mask = pk["mask"].reshape(1, 1, -1)
        zc, sc, bc = conv_bn_stats(t1, pk, stride=stride, act=True,
                                   mish_mask=mask)
        sc = jnp.where(mask > 0, sc, 1.0 / POOL_KS)   # pool channels: /ks
        bc = jnp.where(mask > 0, bc, 0.0)             # (pad channels are 0)
        tc = (zc, sc, bc)
    else:
        # hierarchical path (non-first blocks, stride == 1)
        z1, s1, b1 = t1

        def chunk(i):
            sl = slice(i * width, (i + 1) * width)
            return (z1[..., sl], s1[..., sl], b1[..., sl])

        pieces = []
        sp = None
        for i in range(scale - 1):
            if i == 0 or first:
                sp = conv_bn_stats(chunk(i), p["convs"][i], stride=stride,
                                   act=True)
            else:
                sp = conv_bn_stats(sp, p["convs"][i], stride=1, act=True,
                                   t2=chunk(i))
            pieces.append(sp)
        if scale > 1:
            if first:
                pieces.append(pool1d(chunk(scale - 1), 3, stride, 1, "avg"))
            else:
                pieces.append(chunk(scale - 1))
        if p["ws_pad"] > p["ws"]:
            N, Lp, _ = pieces[0][0].shape
            padc = p["ws_pad"] - p["ws"]
            one, zero = _identity_affine(padc)
            pieces.append((jnp.zeros((N, Lp, padc), jnp.bfloat16), one, zero))
        tc = (jnp.concatenate([pc[0] for pc in pieces], axis=-1),
              jnp.concatenate([pc[1] for pc in pieces], axis=-1),
              jnp.concatenate([pc[2] for pc in pieces], axis=-1))

    z3, s3, b3 = conv_bn_stats(tc, p["conv3"], stride=1, act=False)
    if p["downsample"] is not None:
        zd, sd, bd = conv_bn_stats(t, p["downsample"], stride=stride,
                                   act=False)
        out = bn_add_mish_apply(z3, s3, b3, zd, sd, bd)
    else:
        z0, s0, b0 = t
        out = bn_add_mish_apply(z3, s3, b3, z0, s0, b0)
    one, zero = _identity_affine(out.shape[-1])
    return out, one, zero


def res2net_forward(params, x_ncl):
    x = jnp.transpose(x_ncl, (0, 2, 1)).astype(jnp.bfloat16)   # NCL -> NLC
    one, zero = _identity_affine(x.shape[-1])
    t = (x, one, zero)
    t = conv_bn_stats(t, params["conv1"], stride=2, act=True)
    t = conv_bn_stats(t, params["conv2"], stride=1, act=True)
    t = conv_bn_stats(t, params["conv3"], stride=1, act=True)
    t = pool1d(t, 3, 2, 1, "max")
    for blocks in params["layers"]:
        for bp in blocks:
            t = bottle2neck_forward(t, bp)
    logits = head_pallas(t, params["fc_w"], params["fc_b"])
    return logits[:, :params["num_classes"]]


if __name__ == "__main__":
    key = jax.random.PRNGKey(0)
    # Res2Net(Bottle2neck, layers=[1,1,1,1], c_in=3, num_classes=10)
    params = init_res2net(jax.random.fold_in(key, 1), layers=[1, 1, 1, 1],
                          c_in=3, num_classes=10)
    x = jax.random.normal(jax.random.fold_in(key, 999), (2, 3, 64), jnp.float32)

    out = res2net_forward(params, x)
    out = jax.block_until_ready(out)
    assert out.shape == (2, 10), out.shape
    assert bool(jnp.all(jnp.isfinite(out)))
    print("KERNEL_OK")
</pallas_src>

<mosaic_0001>
module attributes {stable_mosaic.version = 11 : i64} {
  func.func @_conv_stats_kernel(%arg0: i32, %arg1: memref<1x64x3xbf16, #tpu.memory_space<vmem>>, %arg2: memref<1x1x3xf32, #tpu.memory_space<vmem>>, %arg3: memref<1x1x3xf32, #tpu.memory_space<vmem>>, %arg4: memref<3x3x32xbf16, #tpu.memory_space<vmem>>, %arg5: memref<1x32x32xbf16, #tpu.memory_space<vmem>>, %arg6: memref<1x2x32xf32, #tpu.memory_space<vmem>>, %arg7: memref<66x3xf32, #tpu.memory_space<vmem>>) attributes {dimension_semantics = [#tpu.dimension_semantics<parallel>], iteration_bounds = array<i64: 2>, scalar_prefetch = 0 : i64, scratch_operands = 1 : i64, tpu.core_type = #tpu.core_type<tc>, window_params = [{transform_indices = @transform_0, window_bounds = array<i64: 1, 64, 3>}, {pipeline_mode = #tpu.pipeline_mode<synchronous>, transform_indices = @transform_1, window_bounds = array<i64: 1, 1, 3>}, {pipeline_mode = #tpu.pipeline_mode<synchronous>, transform_indices = @transform_2, window_bounds = array<i64: 1, 1, 3>}, {pipeline_mode = #tpu.pipeline_mode<synchronous>, transform_indices = @transform_3, window_bounds = array<i64: 3, 3, 32>}, {transform_indices = @transform_4, window_bounds = array<i64: 1, 32, 32>}, {transform_indices = @transform_5, window_bounds = array<i64: 1, 2, 32>}]} {
    %cst = arith.constant 0.000000e+00 : f32
    %0 = vector.broadcast %cst : f32 to vector<1x3xf32>
    %c0 = arith.constant 0 : index
    %c0_0 = arith.constant 0 : index
    %1 = vector.load %arg7[%c0, %c0_0] : memref<66x3xf32, #tpu.memory_space<vmem>>, vector<1x3xf32>
    tpu.vector_store %arg7[%c0, %c0_0], %0 {strides = array<i32>} : memref<66x3xf32, #tpu.memory_space<vmem>>, vector<1x3xf32>,
    %c65 = arith.constant 65 : index
    %c0_1 = arith.constant 0 : index
    %2 = vector.load %arg7[%c65, %c0_1] : memref<66x3xf32, #tpu.memory_space<vmem>>, vector<1x3xf32>
    tpu.vector_store %arg7[%c65, %c0_1], %0 {strides = array<i32>} : memref<66x3xf32, #tpu.memory_space<vmem>>, vector<1x3xf32>,
    %c0_2 = arith.constant 0 : index
    %c0_3 = arith.constant 0 : index
    %c0_4 = arith.constant 0 : index
    %3 = vector.load %arg1[%c0_2, %c0_3, %c0_4] : memref<1x64x3xbf16, #tpu.memory_space<vmem>>, vector<1x64x3xbf16>
    %4 = vector.shape_cast %3 : vector<1x64x3xbf16> to vector<64x3xbf16>
    %5 = arith.extf %4 : vector<64x3xbf16> to vector<64x3xf32>
    %c0_5 = arith.constant 0 : index
    %c0_6 = arith.constant 0 : index
    %c0_7 = arith.constant 0 : index
    %6 = vector.load %arg2[%c0_5, %c0_6, %c0_7] : memref<1x1x3xf32, #tpu.memory_space<vmem>>, vector<1x1x3xf32>
    %7 = vector.shape_cast %6 : vector<1x1x3xf32> to vector<1x3xf32>
    %8 = vector.broadcast %7 : vector<1x3xf32> to vector<64x3xf32>
    %9 = arith.mulf %5, %8 : vector<64x3xf32>
    %c0_8 = arith.constant 0 : index
    %c0_9 = arith.constant 0 : index
    %c0_10 = arith.constant 0 : index
    %10 = vector.load %arg3[%c0_8, %c0_9, %c0_10] : memref<1x1x3xf32, #tpu.memory_space<vmem>>, vector<1x1x3xf32>
    %11 = vector.shape_cast %10 : vector<1x1x3xf32> to vector<1x3xf32>
    %12 = vector.broadcast %11 : vector<1x3xf32> to vector<64x3xf32>
    %13 = arith.addf %9, %12 : vector<64x3xf32>
    %c1 = arith.constant 1 : index
    %c0_11 = arith.constant 0 : index
    %14 = vector.load %arg7[%c1, %c0_11] : memref<66x3xf32, #tpu.memory_space<vmem>>, vector<64x3xf32>
    tpu.vector_store %arg7[%c1, %c0_11], %13 {strides = array<i32>} : memref<66x3xf32, #tpu.memory_space<vmem>>, vector<64x3xf32>,
    %cst_12 = arith.constant 0.000000e+00 : f32
    %15 = vector.broadcast %cst_12 : f32 to vector<32x32xf32>
    %c0_13 = arith.constant 0 : index
    %c0_14 = arith.constant 0 : index
    %16 = tpu.strided_load %arg7[%c0_13, %c0_14] {strides = array<i32: 2, 1>} : memref<66x3xf32, #tpu.memory_space<vmem>>, vector<32x3xf32>
    %17 = arith.truncf %16 : vector<32x3xf32> to vector<32x3xbf16>
    %c0_15 = arith.constant 0 : index
    %c0_16 = arith.constant 0 : index
    %c0_17 = arith.constant 0 : index
    %18 = vector.load %arg4[%c0_15, %c0_16, %c0_17] : memref<3x3x32xbf16, #tpu.memory_space<vmem>>, vector<1x3x32xbf16>
    %19 = vector.shape_cast %18 : vector<1x3x32xbf16> to vector<3x32xbf16>
    %cst_18 = arith.constant dense<0.000000e+00> : vector<32x32xf32>
    %20 = tpu.matmul %17, %19, %cst_18 {dimension_numbers = #tpu.dot_dimension_numbers<[1], [0], [0], [1], [0, 0, 1, 1], [], []>} : vector<32x3xbf16>, vector<3x32xbf16>, vector<32x32xf32> -> vector<32x32xf32>
    %21 = arith.addf %15, %20 : vector<32x32xf32>
    %c1_19 = arith.constant 1 : index
    %c0_20 = arith.constant 0 : index
    %22 = tpu.strided_load %arg7[%c1_19, %c0_20] {strides = array<i32: 2, 1>} : memref<66x3xf32, #tpu.memory_space<vmem>>, vector<32x3xf32>
    %23 = arith.truncf %22 : vector<32x3xf32> to vector<32x3xbf16>
    %c1_21 = arith.constant 1 : index
    %c0_22 = arith.constant 0 : index
    %c0_23 = arith.constant 0 : index
    %24 = vector.load %arg4[%c1_21, %c0_22, %c0_23] : memref<3x3x32xbf16, #tpu.memory_space<vmem>>, vector<1x3x32xbf16>
    %25 = vector.shape_cast %24 : vector<1x3x32xbf16> to vector<3x32xbf16>
    %cst_24 = arith.constant dense<0.000000e+00> : vector<32x32xf32>
    %26 = tpu.matmul %23, %25, %cst_24 {dimension_numbers = #tpu.dot_dimension_numbers<[1], [0], [0], [1], [0, 0, 1, 1], [], []>} : vector<32x3xbf16>, vector<3x32xbf16>, vector<32x32xf32> -> vector<32x32xf32>
    %27 = arith.addf %21, %26 : vector<32x32xf32>
    %c2 = arith.constant 2 : index
    %c0_25 = arith.constant 0 : index
    %28 = tpu.strided_load %arg7[%c2, %c0_25] {strides = array<i32: 2, 1>} : memref<66x3xf32, #tpu.memory_space<vmem>>, vector<32x3xf32>
    %29 = arith.truncf %28 : vector<32x3xf32> to vector<32x3xbf16>
    %c2_26 = arith.constant 2 : index
    %c0_27 = arith.constant 0 : index
    %c0_28 = arith.constant 0 : index
    %30 = vector.load %arg4[%c2_26, %c0_27, %c0_28] : memref<3x3x32xbf16, #tpu.memory_space<vmem>>, vector<1x3x32xbf16>
    %31 = vector.shape_cast %30 : vector<1x3x32xbf16> to vector<3x32xbf16>
    %cst_29 = arith.constant dense<0.000000e+00> : vector<32x32xf32>
    %32 = tpu.matmul %29, %31, %cst_29 {dimension_numbers = #tpu.dot_dimension_numbers<[1], [0], [0], [1], [0, 0, 1, 1], [], []>} : vector<32x3xbf16>, vector<3x32xbf16>, vector<32x32xf32> -> vector<32x32xf32>
    %33 = arith.addf %27, %32 : vector<32x32xf32>
    %34 = math.absf %33 : vector<32x32xf32>
    %cst_30 = arith.constant 0.000000e+00 : f32
    %35 = vector.broadcast %cst_30 : f32 to vector<32x32xf32>
    %36 = arith.subf %35, %34 : vector<32x32xf32>
    %37 = math.exp %36 : vector<32x32xf32>
    %cst_31 = arith.constant 0.000000e+00 : f32
    %38 = vector.broadcast %cst_31 : f32 to vector<32x32xf32>
    %39 = arith.cmpf oge, %33, %38 : vector<32x32xf32>
    %cst_32 = arith.constant 2.000000e+00 : f32
    %40 = vector.broadcast %cst_32 : f32 to vector<32x32xf32>
    %41 = arith.mulf %40, %37 : vector<32x32xf32>
    %cst_33 = arith.constant 1.000000e+00 : f32
    %42 = vector.broadcast %cst_33 : f32 to vector<32x32xf32>
    %43 = arith.addf %42, %41 : vector<32x32xf32>
    %cst_34 = arith.constant 2.000000e+00 : f32
    %44 = vector.broadcast %cst_34 : f32 to vector<32x32xf32>
    %45 = arith.mulf %44, %37 : vector<32x32xf32>
    %46 = arith.mulf %37, %37 : vector<32x32xf32>
    %47 = arith.addf %45, %46 : vector<32x32xf32>
    %48 = arith.select %39, %43, %47 : vector<32x32xi1>, vector<32x32xf32>
    %cst_35 = arith.constant 0.000000e+00 : f32
    %49 = vector.broadcast %cst_35 : f32 to vector<32x32xf32>
    %50 = arith.cmpf oge, %33, %49 : vector<32x32xf32>
    %cst_36 = arith.constant 2.000000e+00 : f32
    %51 = vector.broadcast %cst_36 : f32 to vector<32x32xf32>
    %52 = arith.mulf %51, %37 : vector<32x32xf32>
    %cst_37 = arith.constant 1.000000e+00 : f32
    %53 = vector.broadcast %cst_37 : f32 to vector<32x32xf32>
    %54 = arith.addf %53, %52 : vector<32x32xf32>
    %cst_38 = arith.constant 2.000000e+00 : f32
    %55 = vector.broadcast %cst_38 : f32 to vector<32x32xf32>
    %56 = arith.mulf %55, %37 : vector<32x32xf32>
    %57 = arith.mulf %56, %37 : vector<32x32xf32>
    %58 = arith.addf %54, %57 : vector<32x32xf32>
    %cst_39 = arith.constant 2.000000e+00 : f32
    %59 = vector.broadcast %cst_39 : f32 to vector<32x32xf32>
    %60 = arith.mulf %59, %37 : vector<32x32xf32>
    %cst_40 = arith.constant 2.000000e+00 : f32
    %61 = vector.broadcast %cst_40 : f32 to vector<32x32xf32>
    %62 = arith.addf %61, %60 : vector<32x32xf32>
    %63 = arith.mulf %37, %37 : vector<32x32xf32>
    %64 = arith.addf %62, %63 : vector<32x32xf32>
    %65 = arith.select %50, %58, %64 : vector<32x32xi1>, vector<32x32xf32>
    %66 = arith.mulf %33, %48 : vector<32x32xf32>
    %67 = tpu.reciprocal %65 {approx = true} : vector<32x32xf32> -> vector<32x32xf32>
    %68 = arith.mulf %66, %67 : vector<32x32xf32>
    %69 = arith.truncf %68 : vector<32x32xf32> to vector<32x32xbf16>
    %c0_41 = arith.constant 0 : index
    %c0_42 = arith.constant 0 : index
    %c0_43 = arith.constant 0 : index
    %70 = vector.load %arg5[%c0_41, %c0_42, %c0_43] : memref<1x32x32xbf16, #tpu.memory_space<vmem>>, vector<1x32x32xbf16>
    %71 = vector.shape_cast %70 : vector<1x32x32xbf16> to vector<32x32xbf16>
    %72 = vector.shape_cast %69 : vector<32x32xbf16> to vector<1x32x32xbf16>
    tpu.vector_store %arg5[%c0_41, %c0_42, %c0_43], %72 {strides = array<i32>} : memref<1x32x32xbf16, #tpu.memory_space<vmem>>, vector<1x32x32xbf16>,
    %cst_44 = arith.constant dense<0.000000e+00> : vector<32xf32>
    %73 = vector.multi_reduction <add>, %68, %cst_44 [0] : vector<32x32xf32> to vector<32xf32>
    %74 = vector.shape_cast %73 : vector<32xf32> to vector<1x32xf32>
    %75 = arith.mulf %68, %68 : vector<32x32xf32>
    %cst_45 = arith.constant dense<0.000000e+00> : vector<32xf32>
    %76 = vector.multi_reduction <add>, %75, %cst_45 [0] : vector<32x32xf32> to vector<32xf32>
    %77 = vector.shape_cast %76 : vector<32xf32> to vector<1x32xf32>
    %78 = tpu.concatenate %74, %77 in 0 : vector<1x32xf32>, vector<1x32xf32> -> vector<2x32xf32>
    %c0_46 = arith.constant 0 : index
    %c0_47 = arith.constant 0 : index
    %c0_48 = arith.constant 0 : index
    %79 = vector.load %arg6[%c0_46, %c0_47, %c0_48] : memref<1x2x32xf32, #tpu.memory_space<vmem>>, vector<1x2x32xf32>
    %80 = vector.shape_cast %79 : vector<1x2x32xf32> to vector<2x32xf32>
    %81 = vector.shape_cast %78 : vector<2x32xf32> to vector<1x2x32xf32>
    tpu.vector_store %arg6[%c0_46, %c0_47, %c0_48], %81 {strides = array<i32>} : memref<1x2x32xf32, #tpu.memory_space<vmem>>, vector<1x2x32xf32>,
    return
  }
  func.func @transform_0(%arg0: i32) -> (i32, i32, i32) {
    %c0_i32 = arith.constant 0 : i32
    %c0_i32_0 = arith.constant 0 : i32
    %c0_i32_1 = arith.constant 0 : i32
    return %arg0, %c0_i32, %c0_i32_0 : i32, i32, i32
  }
  func.func @transform_1(%arg0: i32) -> (i32, i32, i32) {
    %c0_i32 = arith.constant 0 : i32
    %c0_i32_0 = arith.constant 0 : i32
    %c0_i32_1 = arith.constant 0 : i32
    %c0_i32_2 = arith.constant 0 : i32
    return %c0_i32, %c0_i32_0, %c0_i32_1 : i32, i32, i32
  }
  func.func @transform_2(%arg0: i32) -> (i32, i32, i32) {
    %c0_i32 = arith.constant 0 : i32
    %c0_i32_0 = arith.constant 0 : i32
    %c0_i32_1 = arith.constant 0 : i32
    %c0_i32_2 = arith.constant 0 : i32
    return %c0_i32, %c0_i32_0, %c0_i32_1 : i32, i32, i32
  }
  func.func @transform_3(%arg0: i32) -> (i32, i32, i32) {
    %c0_i32 = arith.constant 0 : i32
    %c0_i32_0 = arith.constant 0 : i32
    %c0_i32_1 = arith.constant 0 : i32
    %c0_i32_2 = arith.constant 0 : i32
    return %c0_i32, %c0_i32_0, %c0_i32_1 : i32, i32, i32
  }
  func.func @transform_4(%arg0: i32) -> (i32, i32, i32) {
    %c0_i32 = arith.constant 0 : i32
    %c0_i32_0 = arith.constant 0 : i32
    %c0_i32_1 = arith.constant 0 : i32
    return %arg0, %c0_i32, %c0_i32_0 : i32, i32, i32
  }
  func.func @transform_5(%arg0: i32) -> (i32, i32, i32) {
    %c0_i32 = arith.constant 0 : i32
    %c0_i32_0 = arith.constant 0 : i32
    %c0_i32_1 = arith.constant 0 : i32
    return %arg0, %c0_i32, %c0_i32_0 : i32, i32, i32
  }
}

</mosaic_0001>

<llo_original>
// kernel: tpu_custom_call.1
$region0: #{tpu_custom_call.1}
  #allocation0 [shape = 'u32[]', space=smem, size = 0x4, offset = 0x4, fixed_abs, tag = 'smem constant byte address 0x4 - core index']
  #allocation1 [shape = 'u32[144,128]{1,0:T(1,128)}', space=vmem, size = 0x12000, scoped, tag = 'internal scratch']
  #allocation2 [shape = 'f32[66,3]{1,0:T(8,128)}', space=vmem, size = 0x9000, scoped, tag = 'scratch operand']
  %s0 = inlined_call_operand.vmem [shape: bf16[2,64,3], index: 0, kind: input, shape index: {}]
  %s1 = inlined_call_operand.vmem [shape: f32[1,1,3], index: 1, kind: input, shape index: {}]
  %s2 = inlined_call_operand.vmem [shape: f32[1,1,3], index: 2, kind: input, shape index: {}]
  %s3 = inlined_call_operand.vmem [shape: bf16[3,3,32], index: 3, kind: input, shape index: {}]
  %s4 = inlined_call_operand.hbm [shape: bf16[2,32,32], index: 4, kind: output, shape index: {0}]
  %s5 = inlined_call_operand.hbm [shape: f32[2,2,32], index: 5, kind: output, shape index: {1}]
  %6 = xla_tuple %s4, %s5
  %s7 = sld [smem:[#allocation0]]
  $region57: #{tpu_custom_call.1} parent=0
    _
  %s9 = ssub.s32 1, %s7
  %s10 = scalar_select 0, %s9, %s7
  $region1: #{tpu_custom_call.1} parent=0
    #allocation3 [shape = 'u8[16384]{0}', space=vmem, size = 0x4000, scoped, tag = 'output window, operand 0']
    #allocation4 [shape = 's32[2]{0}', space=sflag, size = 0x8, scoped, tag = 'scoped memory for tpu_custom_call.1']
    #allocation5 [shape = 'u8[2048]{0}', space=vmem, size = 0x800, scoped, tag = 'output window, operand 1']
    #allocation6 [shape = 's32[2]{0}', space=sflag, size = 0x8, scoped, tag = 'scoped memory for tpu_custom_call.1']
    %11 = vsyncpa [#allocation4], 0
    %s12 = scalar_lea.sflag [#allocation4], 1
    %13 = vsyncpa %s12, 0
    %14 = vsyncpa [#allocation6], 0
    %s15 = scalar_lea.sflag [#allocation6], 1
    %16 = vsyncpa %s15, 0
    loop: start=0, step=1, limit=4
    $region2: #{tpu_custom_call.1} parent=1 // loop_pre_header
      _
    $region3: #{tpu_custom_call.1} parent=1 // loop_header
      %s18 = sphi 0, %s22
      %p19 = scmp.ge.s32.totalorder %s18, 4
      %s28 = sphi 0, %s30
      %s31 = sphi 0, %s28
      %s32 = sphi 0, %s31
      %s48 = sphi 0, %s32
      %s52 = sphi 0, %s52
      %s54 = sphi 0, %s52
      %s55 = sphi 0, %s54
      %s69 = sphi 0, %s55
      %s73 = sphi 0, %s73
      %s75 = sphi 0, %s73
      %s76 = sphi 0, %s75
      %s90 = sphi 0, %s76
      %s94 = sphi 0, %s94
      %s96 = sphi 0, %s94
      %s97 = sphi 0, %s96
      %s111 = sphi 0, %s97
      %s117 = sphi 0, %s119
      %s120 = sphi 0, %s117
      %s121 = sphi 0, %s120
      %s137 = sphi 0, %s121
      %s143 = sphi 0, %s145
      %s146 = sphi 0, %s143
      %s147 = sphi 0, %s146
      %s163 = sphi 0, %s147
    $region4: #{tpu_custom_call.1} parent=1 // loop_header_branch
      %21 = sbr.rel (%p19) target = $region8
    $region5: #{tpu_custom_call.1} parent=1 // loop_body
      %s23 = ssub.s32 %s18, 1
      %s24 = ssub.s32 %s18, 2
      %s25 = sadd.s32 %s18, 1
      %s26 = ssub.s32 %s18, %s25
      %p27 = scmp.eq.s32.totalorder %s26, 0
      %s29 = sadd.s32 %s28, 1
      %s30 = scalar_select %p27, %s28, %s29
      %p33 = pneg %p27
      %p34 = scmp.eq.s32.totalorder %s18, 1
      %p35 = por %p33, %p34
      %p36 = scmp.ne.s32.totalorder %s28, %s31
      %p37 = scmp.eq.s32.totalorder %s18, 0
      %p38 = por %p36, %p37
      %p39 = scmp.ne.s32.totalorder %s28, %s31
      %p40 = scmp.eq.s32.totalorder %s23, 1
      %p41 = por %p39, %p40
      %p42 = scmp.ne.s32.totalorder %s31, %s32
      %p43 = scmp.eq.s32.totalorder %s23, 0
      %p44 = por %p42, %p43
      %p45 = scmp.ne.s32.totalorder %s31, %s32
      %p46 = scmp.eq.s32.totalorder %s24, 1
      %p47 = por %p45, %p46
      %p49 = scmp.ne.s32.totalorder %s32, %s48
      %p50 = scmp.eq.s32.totalorder %s24, 0
      %p51 = por %p49, %p50
      %s53 = sadd.s32 %s52, 1
      %p56 = scmp.eq.s32.totalorder %s18, 1
      %p57 = scmp.ne.s32.totalorder %s52, %s54
      %p58 = scmp.eq.s32.totalorder %s18, 0
      %p59 = por %p57, %p58
      %p60 = scmp.ne.s32.totalorder %s52, %s54
      %p61 = scmp.eq.s32.totalorder %s23, 1
      %p62 = por %p60, %p61
      %p63 = scmp.ne.s32.totalorder %s54, %s55
      %p64 = scmp.eq.s32.totalorder %s23, 0
      %p65 = por %p63, %p64
      %p66 = scmp.ne.s32.totalorder %s54, %s55
      %p67 = scmp.eq.s32.totalorder %s24, 1
      %p68 = por %p66, %p67
      %p70 = scmp.ne.s32.totalorder %s55, %s69
      %p71 = scmp.eq.s32.totalorder %s24, 0
      %p72 = por %p70, %p71
      %s74 = sadd.s32 %s73, 1
      %p77 = scmp.eq.s32.totalorder %s18, 1
      %p78 = scmp.ne.s32.totalorder %s73, %s75
      %p79 = scmp.eq.s32.totalorder %s18, 0
      %p80 = por %p78, %p79
      %p81 = scmp.ne.s32.totalorder %s73, %s75
      %p82 = scmp.eq.s32.totalorder %s23, 1
      %p83 = por %p81, %p82
      %p84 = scmp.ne.s32.totalorder %s75, %s76
      %p85 = scmp.eq.s32.totalorder %s23, 0
      %p86 = por %p84, %p85
      %p87 = scmp.ne.s32.totalorder %s75, %s76
      %p88 = scmp.eq.s32.totalorder %s24, 1
      %p89 = por %p87, %p88
      %p91 = scmp.ne.s32.totalorder %s76, %s90
      %p92 = scmp.eq.s32.totalorder %s24, 0
      %p93 = por %p91, %p92
      %s95 = sadd.s32 %s94, 1
      %p98 = scmp.eq.s32.totalorder %s18, 1
      %p99 = scmp.ne.s32.totalorder %s94, %s96
      %p100 = scmp.eq.s32.totalorder %s18, 0
      %p101 = por %p99, %p100
      %p102 = scmp.ne.s32.totalorder %s94, %s96
      %p103 = scmp.eq.s32.totalorder %s23, 1
      %p104 = por %p102, %p103
      %p105 = scmp.ne.s32.totalorder %s96, %s97
      %p106 = scmp.eq.s32.totalorder %s23, 0
      %p107 = por %p105, %p106
      %p108 = scmp.ne.s32.totalorder %s96, %s97
      %p109 = scmp.eq.s32.totalorder %s24, 1
      %p110 = por %p108, %p109
      %p112 = scmp.ne.s32.totalorder %s97, %s111
      %p113 = scmp.eq.s32.totalorder %s24, 0
      %p114 = por %p112, %p113
      %s115 = ssub.s32 %s18, %s25
      %p116 = scmp.eq.s32.totalorder %s115, 0
      %s118 = sadd.s32 %s117, 1
      %s119 = scalar_select %p116, %s117, %s118
      %p122 = pneg %p116
      %p123 = scmp.eq.s32.totalorder %s18, 1
      %p124 = por %p122, %p123
      %p125 = scmp.ne.s32.totalorder %s117, %s120
      %p126 = scmp.eq.s32.totalorder %s18, 0
      %p127 = por %p125, %p126
      %p128 = scmp.ne.s32.totalorder %s117, %s120
      %p129 = scmp.eq.s32.totalorder %s23, 1
      %p130 = por %p128, %p129
      %p131 = scmp.ne.s32.totalorder %s120, %s121
      %p132 = scmp.eq.s32.totalorder %s23, 0
      %p133 = por %p131, %p132
      %p134 = scmp.ne.s32.totalorder %s120, %s121
      %p135 = scmp.eq.s32.totalorder %s24, 1
      %p136 = por %p134, %p135
      %p138 = scmp.ne.s32.totalorder %s121, %s137
      %p139 = scmp.eq.s32.totalorder %s24, 0
      %p140 = por %p138, %p139
      %s141 = ssub.s32 %s18, %s25
      %p142 = scmp.eq.s32.totalorder %s141, 0
      %s144 = sadd.s32 %s143, 1
      %s145 = scalar_select %p142, %s143, %s144
      %p148 = pneg %p142
      %p149 = scmp.eq.s32.totalorder %s18, 1
      %p150 = por %p148, %p149
      %p151 = scmp.ne.s32.totalorder %s143, %s146
      %p152 = scmp.eq.s32.totalorder %s18, 0
      %p153 = por %p151, %p152
      %p154 = scmp.ne.s32.totalorder %s143, %s146
      %p155 = scmp.eq.s32.totalorder %s23, 1
      %p156 = por %p154, %p155
      %p157 = scmp.ne.s32.totalorder %s146, %s147
      %p158 = scmp.eq.s32.totalorder %s23, 0
      %p159 = por %p157, %p158
      %p160 = scmp.ne.s32.totalorder %s146, %s147
      %p161 = scmp.eq.s32.totalorder %s24, 1
      %p162 = por %p160, %p161
      %p164 = scmp.ne.s32.totalorder %s147, %s163
      %p165 = scmp.eq.s32.totalorder %s24, 0
      %p166 = por %p164, %p165
      %p167 = scmp.le.s32.totalorder 1, %s18
      %p168 = scmp.lt.s32.totalorder %s18, 3
      %p169 = pnand %p167, %p168
      %p170 = pneg %p169
      // Predicated region
      $region9: #{tpu_custom_call.1} parent=5 // pred_check
        _
      $region10: #{tpu_custom_call.1} parent=5 // pred_check_branch
        %172 = sbr.rel (%p169) target = $region12
      $region11: #{tpu_custom_call.1} parent=5 // pred_region
        %s173 = ssub.s32 %s18, 1
        // Predicated region
        $region13: #{tpu_custom_call.1} parent=11 // pred_check
          %p174 = pneg %p65
        $region14: #{tpu_custom_call.1} parent=11 // pred_check_branch
          %176 = sbr.rel (%p174) target = $region16
        $region15: #{tpu_custom_call.1} parent=11 // pred_region
          _
        $region16: #{tpu_custom_call.1} parent=11 // pred_fallthru
          _
        // Predicated region
        $region17: #{tpu_custom_call.1} parent=11 // pred_check
          %p177 = pneg %p86
        $region18: #{tpu_custom_call.1} parent=11 // pred_check_branch
          %179 = sbr.rel (%p177) target = $region20
        $region19: #{tpu_custom_call.1} parent=11 // pred_region
          _
        $region20: #{tpu_custom_call.1} parent=11 // pred_fallthru
          _
        // Predicated region
        $region21: #{tpu_custom_call.1} parent=11 // pred_check
          %p180 = pneg %p107
        $region22: #{tpu_custom_call.1} parent=11 // pred_check_branch
          %182 = sbr.rel (%p180) target = $region24
        $region23: #{tpu_custom_call.1} parent=11 // pred_region
          _
        $region24: #{tpu_custom_call.1} parent=11 // pred_fallthru
          _
      $region12: #{tpu_custom_call.1} parent=5 // pred_fallthru
        _
      %p183 = scmp.lt.s32.totalorder %s18, 2
      // Predicated region
      $region25: #{tpu_custom_call.1} parent=5 // pred_check
        %p184 = pneg %p183
      $region26: #{tpu_custom_call.1} parent=5 // pred_check_branch
        %186 = sbr.rel (%p184) target = $region28
      $region27: #{tpu_custom_call.1} parent=5 // pred_region
        // Predicated region
        $region29: #{tpu_custom_call.1} parent=27 // pred_check
          %p187 = pneg %p38
        $region30: #{tpu_custom_call.1} parent=27 // pred_check_branch
          %189 = sbr.rel (%p187) target = $region32
        $region31: #{tpu_custom_call.1} parent=27 // pred_region
          %p190 = scmp.lt.s32.totalorder %s18, 1
          %s191 = scalar_select %p190, %s18, 1
          %s192 = smul.addr %s191, 8
          %s193 = smul.addr %s192, 4
          %s194 = scalar_lea.vmem %s0, %s193
        $region32: #{tpu_custom_call.1} parent=27 // pred_fallthru
          _
      $region28: #{tpu_custom_call.1} parent=5 // pred_fallthru
        _
      %p195 = scmp.le.s32.totalorder 1, %s18
      %p196 = scmp.lt.s32.totalorder %s18, 3
      %p197 = pnand %p195, %p196
      %p198 = pneg %p197
      // Predicated region
      $region33: #{tpu_custom_call.1} parent=5 // pred_check
        _
      $region34: #{tpu_custom_call.1} parent=5 // pred_check_branch
        %200 = sbr.rel (%p197) target = $region36
      $region35: #{tpu_custom_call.1} parent=5 // pred_region
        %s201 = ssub.s32 %s18, 1
        %p202 = scmp.lt.s32.totalorder %s23, 1
        %s203 = scalar_select %p202, %s23, 1
        %s204 = smul.addr %s203, 8
        %s205 = smul.addr %s204, 4
        %s206 = scalar_lea.vmem %s0, %s205
        %p207 = pneg %p44
        %p208 = pneg %p41
        %p209 = pneg %p65
        %p210 = pneg %p62
        %p211 = pneg %p86
        %p212 = pneg %p83
        %p213 = pneg %p107
        %p214 = pneg %p104
        %p215 = pneg %p133
        %p216 = pneg %p130
        %s217 = sand.u32 %s120, 1
        %s218 = scalar_lea.sflag [#allocation4], %s217
        %s219 = sand.u32 %s120, 1
        %s220 = smul.addr %s219, 16
        %s221 = scalar_lea.vmem [#allocation3], %s220
        %p222 = pneg %p159
        %p223 = pneg %p156
        %s224 = sand.u32 %s146, 1
        %s225 = scalar_lea.sflag [#allocation6], %s224
        %s226 = sand.u32 %s146, 1
        %s227 = smul.addr %s226, 2
        %s228 = scalar_lea.vmem [#allocation5], %s227
        %p229 = scmp.lt.s32.totalorder %s23, 1
        %s230 = scalar_select %p229, %s23, 1
        %s231 = smul.addr %s230, 8
        %s232 = smul.addr %s231, 4
        %s233 = scalar_lea.vmem %s0, %s232
        %vm235 = vcmask 16384
        %236 = vst.msk [vmem:[#allocation2] sm:$0x1] %vm235, 0.0
        %237 = vst.msk [vmem:[#allocation2 + $0x41] sm:$0x1] %vm235, 0.0
        %v238 = vld [vmem:[%s233] sm:$0xf]
        %v239 = vld [vmem:[%s233 + $0x4] sm:$0xf]
        %v240 = vld [vmem:[%s233 + $0x8] sm:$0xf]
        %v241 = vld [vmem:[%s233 + $0xc] sm:$0xf]
        %v242 = vld [vmem:[%s233 + $0x10] sm:$0xf]
        %v243 = vld [vmem:[%s233 + $0x14] sm:$0xf]
        %v244 = vld [vmem:[%s233 + $0x18] sm:$0xf]
        %v245 = vld [vmem:[%s233 + $0x1c] sm:$0xf]
        %v246 = vunpack.c.l.bf16 %v238
        %v247 = vunpack.c.l.bf16 %v239
        %v248 = vunpack.c.l.bf16 %v240
        %v249 = vunpack.c.l.bf16 %v241
        %v250 = vunpack.c.l.bf16 %v242
        %v251 = vunpack.c.l.bf16 %v243
        %v252 = vunpack.c.l.bf16 %v244
        %v253 = vunpack.c.l.bf16 %v245
        %v254 = vld [vmem:[%s1] sm:$0x1]
        %v256 = vlaneseq
        %v257 = vshrl.u32 %v256, 7
        %v258 = vsub.s32 0, %v257
        %v259 = vrot.slane %v254, %v258
        %v261 = vmul.f32 %v246, %v259
        %v262 = vmul.f32 %v247, %v259
        %v263 = vmul.f32 %v248, %v259
        %v264 = vmul.f32 %v249, %v259
        %v265 = vmul.f32 %v250, %v259
        %v266 = vmul.f32 %v251, %v259
        %v267 = vmul.f32 %v252, %v259
        %v268 = vmul.f32 %v253, %v259
        %v269 = vld [vmem:[%s2] sm:$0x1]
        %v271 = vlaneseq
        %v272 = vshrl.u32 %v271, 7
        %v273 = vsub.s32 0, %v272
        %v274 = vrot.slane %v269, %v273
        %v276 = vadd.f32 %v261, %v274
        %v277 = vadd.f32 %v262, %v274
        %v278 = vadd.f32 %v263, %v274
        %v279 = vadd.f32 %v264, %v274
        %v280 = vadd.f32 %v265, %v274
        %v281 = vadd.f32 %v266, %v274
        %v282 = vadd.f32 %v267, %v274
        %v283 = vadd.f32 %v268, %v274
        %vm284 = vcmask 23552
        %285 = vst.msk [vmem:[#allocation2 + $0x1] sm:$0xff] %vm284, %v276
        %286 = vst.msk [vmem:[#allocation2 + $0x9] sm:$0xff] %vm284, %v277
        %287 = vst.msk [vmem:[#allocation2 + $0x11] sm:$0xff] %vm284, %v278
        %288 = vst.msk [vmem:[#allocation2 + $0x19] sm:$0xff] %vm284, %v279
        %289 = vst.msk [vmem:[#allocation2 + $0x21] sm:$0xff] %vm284, %v280
        %290 = vst.msk [vmem:[#allocation2 + $0x29] sm:$0xff] %vm284, %v281
        %291 = vst.msk [vmem:[#allocation2 + $0x31] sm:$0xff] %vm284, %v282
        %292 = vst.msk [vmem:[#allocation2 + $0x39] sm:$0xff] %vm284, %v283
        %v293 = vld [vmem:[#allocation2] ss:$2 sm:$0xff]
        %s294 = scalar_lea.vmem [#allocation2], 16
        %v295 = vld [vmem:[%s294] ss:$2 sm:$0xff]
        %s296 = scalar_lea.vmem [#allocation2], 32
        %v297 = vld [vmem:[%s296] ss:$2 sm:$0xff]
        %s298 = scalar_lea.vmem [#allocation2], 48
        %v299 = vld [vmem:[%s298] ss:$2 sm:$0xff]
        %v300 = vpack.c.bf16 %v295, %v293
        %v301 = vpack.c.bf16 %v299, %v297
        %v302 = vld [vmem:[%s3] sm:$0x3]
        %s303 = scalar_lea.vmem [#allocation2], 1
        %v304 = vld [vmem:[%s303] ss:$2 sm:$0xff]
        %s305 = scalar_lea.vmem [#allocation2], 17
        %v306 = vld [vmem:[%s305] ss:$2 sm:$0xff]
        %s307 = scalar_lea.vmem [#allocation2], 33
        %v308 = vld [vmem:[%s307] ss:$2 sm:$0xff]
        %s309 = scalar_lea.vmem [#allocation2], 49
        %v310 = vld [vmem:[%s309] ss:$2 sm:$0xff]
        %v311 = vpack.c.bf16 %v306, %v304
        %v312 = vpack.c.bf16 %v310, %v308
        %s313 = scalar_lea.vmem %s3, 2
        %v314 = vld [vmem:[%s313] sm:$0x3]
        %v316 = vsel %vm284, %v311, 0
        %v319 = vsel %vm284, %v312, 0
        %vm321 = vcmask 1040384
        %vm322 = vcmask 1041408
        %v323 = vsel %vm321, 4294967295, 65535
        %v324 = vsel %vm322, %v323, 0
        %v326 = vand.u32 %v314, %v324
        %328 = vmatprep.subr.bf16.mxu0 0
        %329 = vmatpush1.bf16.msra.mxu0 0
        %330 = vmatprep.subr.bf16.mxu0 0
        %331 = vmatpush1.bf16.msra.mxu0 0
        %332 = vmatprep.subr.bf16.mxu0 0
        %333 = vmatpush1.bf16.msra.mxu0 0
        %334 = vmatprep.subr.bf16.mxu0 0
        %335 = vmatpush1.bf16.msra.mxu0 0
        %336 = vmatprep.subr.bf16.mxu0 0
        %337 = vmatpush1.bf16.msra.mxu0 0
        %338 = vmatprep.subr.bf16.mxu0 0
        %339 = vmatpush1.bf16.msra.mxu0 0
        %340 = vmatprep.subr.bf16.mxu0 0
        %341 = vmatpush1.bf16.msra.mxu0 0
        %342 = vmatprep.subr.bf16.mxu0 0
        %343 = vmatpush1.bf16.msra.mxu0 %v326
        %344 = vmatprep.subr.bf16.mxu0 0
        %345 = vmatpush2.bf16.msra.mxu0 0
        %346 = vmatprep.subr.bf16.mxu0 0
        %347 = vmatpush2.bf16.msra.mxu0 0
        %348 = vmatprep.subr.bf16.mxu0 0
        %349 = vmatpush2.bf16.msra.mxu0 0
        %350 = vmatprep.subr.bf16.mxu0 0
        %351 = vmatpush2.bf16.msra.mxu0 0
        %352 = vmatprep.subr.bf16.mxu0 0
        %353 = vmatpush2.bf16.msra.mxu0 0
        %354 = vmatprep.subr.bf16.mxu0 0
        %355 = vmatpush2.bf16.msra.mxu0 0
        %356 = vmatprep.subr.bf16.mxu0 0
        %357 = vmatpush2.bf16.msra.mxu0 0
        %358 = vmatprep.subr.bf16.mxu0 0
        %359 = vmatpush2.bf16.msra.mxu0 0
        %360 = vmatprep.mubr.bf16.mxu0 0
        %361 = vmatmul.mubr.bf16.gmra.mxu0 %v316
        %v362 = vpop.f32.mrf.mxu0
        %v363 = vadd.f32 0.0, %v362
        %v364 = vpop.f32.mrf.mxu0
        %v365 = vpop.f32.mrf.mxu0
        %v366 = vadd.f32 0.0, %v365
        %v367 = vpop.f32.mrf.mxu0
        %368 = vmatprep.mubr.bf16.mxu0 0
        %369 = vmatmul.mubr.bf16.gmra.mxu0 %v319
        %v370 = vpop.f32.mrf.mxu0
        %v371 = vadd.f32 0.0, %v370
        %v372 = vpop.f32.mrf.mxu0
        %v373 = vpop.f32.mrf.mxu0
        %v374 = vadd.f32 0.0, %v373
        %v375 = vpop.f32.mrf.mxu0
        %376 = vdwg.mxu0
        %v378 = vsel %vm284, %v300, 0
        %v381 = vsel %vm284, %v301, 0
        %v384 = vand.u32 %v302, %v324
        %386 = vmatprep.subr.bf16.mxu0 0
        %387 = vmatpush1.bf16.msra.mxu0 0
        %388 = vmatprep.subr.bf16.mxu0 0
        %389 = vmatpush1.bf16.msra.mxu0 0
        %390 = vmatprep.subr.bf16.mxu0 0
        %391 = vmatpush1.bf16.msra.mxu0 0
        %392 = vmatprep.subr.bf16.mxu0 0
        %393 = vmatpush1.bf16.msra.mxu0 0
        %394 = vmatprep.subr.bf16.mxu0 0
        %395 = vmatpush1.bf16.msra.mxu0 0
        %396 = vmatprep.subr.bf16.mxu0 0
        %397 = vmatpush1.bf16.msra.mxu0 0
        %398 = vmatprep.subr.bf16.mxu0 0
        %399 = vmatpush1.bf16.msra.mxu0 0
        %400 = vmatprep.subr.bf16.mxu0 0
        %401 = vmatpush1.bf16.msra.mxu0 %v384
        %402 = vmatprep.subr.bf16.mxu0 0
        %403 = vmatpush2.bf16.msra.mxu0 0
        %404 = vmatprep.subr.bf16.mxu0 0
        %405 = vmatpush2.bf16.msra.mxu0 0
        %406 = vmatprep.subr.bf16.mxu0 0
        %407 = vmatpush2.bf16.msra.mxu0 0
        %408 = vmatprep.subr.bf16.mxu0 0
        %409 = vmatpush2.bf16.msra.mxu0 0
        %410 = vmatprep.subr.bf16.mxu0 0
        %411 = vmatpush2.bf16.msra.mxu0 0
        %412 = vmatprep.subr.bf16.mxu0 0
        %413 = vmatpush2.bf16.msra.mxu0 0
        %414 = vmatprep.subr.bf16.mxu0 0
        %415 = vmatpush2.bf16.msra.mxu0 0
        %416 = vmatprep.subr.bf16.mxu0 0
        %417 = vmatpush2.bf16.msra.mxu0 0
        %418 = vmatprep.mubr.bf16.mxu0 0
        %419 = vmatmul.mubr.bf16.gmra.mxu0 %v378
        %v420 = vpop.f32.mrf.mxu0
        %v421 = vadd.f32 %v363, %v420
        %v422 = vpop.f32.mrf.mxu0
        %v423 = vpop.f32.mrf.mxu0
        %v424 = vadd.f32 %v366, %v423
        %v425 = vpop.f32.mrf.mxu0
        %426 = vmatprep.mubr.bf16.mxu0 0
        %427 = vmatmul.mubr.bf16.gmra.mxu0 %v381
        %v428 = vpop.f32.mrf.mxu0
        %v429 = vadd.f32 %v371, %v428
        %v430 = vpop.f32.mrf.mxu0
        %v431 = vpop.f32.mrf.mxu0
        %v432 = vadd.f32 %v374, %v431
        %v433 = vpop.f32.mrf.mxu0
        %434 = vdwg.mxu0
        %s435 = scalar_lea.vmem [#allocation2], 2
        %v436 = vld [vmem:[%s435] ss:$2 sm:$0xff]
        %s437 = scalar_lea.vmem [#allocation2], 18
        %v438 = vld [vmem:[%s437] ss:$2 sm:$0xff]
        %s439 = scalar_lea.vmem [#allocation2], 34
        %v440 = vld [vmem:[%s439] ss:$2 sm:$0xff]
        %s441 = scalar_lea.vmem [#allocation2], 50
        %v442 = vld [vmem:[%s441] ss:$2 sm:$0xff]
        %v443 = vpack.c.bf16 %v438, %v436
        %v444 = vpack.c.bf16 %v442, %v440
        %s445 = scalar_lea.vmem %s3, 4
        %v446 = vld [vmem:[%s445] sm:$0x3]
        %v448 = vsel %vm284, %v443, 0
        %v451 = vsel %vm284, %v444, 0
        %v454 = vand.u32 %v446, %v324
        %456 = vmatprep.subr.bf16.mxu0 0
        %457 = vmatpush1.bf16.msra.mxu0 0
        %458 = vmatprep.subr.bf16.mxu0 0
        %459 = vmatpush1.bf16.msra.mxu0 0
        %460 = vmatprep.subr.bf16.mxu0 0
        %461 = vmatpush1.bf16.msra.mxu0 0
        %462 = vmatprep.subr.bf16.mxu0 0
        %463 = vmatpush1.bf16.msra.mxu0 0
        %464 = vmatprep.subr.bf16.mxu0 0
        %465 = vmatpush1.bf16.msra.mxu0 0
        %466 = vmatprep.subr.bf16.mxu0 0
        %467 = vmatpush1.bf16.msra.mxu0 0
        %468 = vmatprep.subr.bf16.mxu0 0
        %469 = vmatpush1.bf16.msra.mxu0 0
        %470 = vmatprep.subr.bf16.mxu0 0
        %471 = vmatpush1.bf16.msra.mxu0 %v454
        %472 = vmatprep.subr.bf16.mxu0 0
        %473 = vmatpush2.bf16.msra.mxu0 0
        %474 = vmatprep.subr.bf16.mxu0 0
        %475 = vmatpush2.bf16.msra.mxu0 0
        %476 = vmatprep.subr.bf16.mxu0 0
        %477 = vmatpush2.bf16.msra.mxu0 0
        %478 = vmatprep.subr.bf16.mxu0 0
        %479 = vmatpush2.bf16.msra.mxu0 0
        %480 = vmatprep.subr.bf16.mxu0 0
        %481 = vmatpush2.bf16.msra.mxu0 0
        %482 = vmatprep.subr.bf16.mxu0 0
        %483 = vmatpush2.bf16.msra.mxu0 0
        %484 = vmatprep.subr.bf16.mxu0 0
        %485 = vmatpush2.bf16.msra.mxu0 0
        %486 = vmatprep.subr.bf16.mxu0 0
        %487 = vmatpush2.bf16.msra.mxu0 0
        %488 = vmatprep.mubr.bf16.mxu0 0
        %489 = vmatmul.mubr.bf16.gmra.mxu0 %v448
        %v490 = vpop.f32.mrf.mxu0
        %v491 = vadd.f32 0.0, %v490
        %v492 = vpop.f32.mrf.mxu0
        %v493 = vpop.f32.mrf.mxu0
        %v494 = vadd.f32 0.0, %v493
        %v495 = vpop.f32.mrf.mxu0
        %496 = vmatprep.mubr.bf16.mxu0 0
        %497 = vmatmul.mubr.bf16.gmra.mxu0 %v451
        %v498 = vpop.f32.mrf.mxu0
        %v499 = vadd.f32 0.0, %v498
        %v500 = vpop.f32.mrf.mxu0
        %v501 = vpop.f32.mrf.mxu0
        %v502 = vadd.f32 0.0, %v501
        %v503 = vpop.f32.mrf.mxu0
        %504 = vdwg.mxu0
        %v505 = vadd.f32 %v421, %v491
        %v506 = vadd.f32 %v424, %v494
        %v507 = vadd.f32 %v429, %v499
        %v508 = vadd.f32 %v432, %v502
        %v509 = vand.u32 2147483647, %v505
        %v510 = vand.u32 2147483647, %v506
        %v511 = vand.u32 2147483647, %v507
        %v512 = vand.u32 2147483647, %v508
        %v513 = vsub.f32 0.0, %v509
        %v514 = vsub.f32 0.0, %v510
        %v515 = vsub.f32 0.0, %v511
        %v516 = vsub.f32 0.0, %v512
        %v517 = vmul.f32 %v513, 1.442695
        %v518 = vpow.pop %v517
        %v519 = vmul.f32 %v514, 1.442695
        %v520 = vpow.pop %v519
        %v521 = vmul.f32 %v515, 1.442695
        %v522 = vpow.pop %v521
        %v523 = vmul.f32 %v516, 1.442695
        %v524 = vpow.pop %v523
        %vm525 = vcmp.ge.f32.partialorder %v505, 0.0
        %vm526 = vcmp.ge.f32.partialorder %v506, 0.0
        %vm527 = vcmp.ge.f32.partialorder %v507, 0.0
        %vm528 = vcmp.ge.f32.partialorder %v508, 0.0
        %v529 = vmul.f32 %v518, 2.0
        %v530 = vmul.f32 %v520, 2.0
        %v531 = vmul.f32 %v522, 2.0
        %v532 = vmul.f32 %v524, 2.0
        %v533 = vadd.f32 %v529, 1.0
        %v534 = vadd.f32 %v530, 1.0
        %v535 = vadd.f32 %v531, 1.0
        %v536 = vadd.f32 %v532, 1.0
        %v537 = vmul.f32 %v518, %v518
        %v538 = vmul.f32 %v520, %v520
        %v539 = vmul.f32 %v522, %v522
        %v540 = vmul.f32 %v524, %v524
        %v541 = vadd.f32 %v529, %v537
        %v542 = vadd.f32 %v530, %v538
        %v543 = vadd.f32 %v531, %v539
        %v544 = vadd.f32 %v532, %v540
        %v545 = vsel %vm525, %v533, %v541
        %v546 = vsel %vm526, %v534, %v542
        %v547 = vsel %vm527, %v535, %v543
        %v548 = vsel %vm528, %v536, %v544
        %v549 = vmul.f32 %v529, %v518
        %v550 = vmul.f32 %v530, %v520
        %v551 = vmul.f32 %v531, %v522
        %v552 = vmul.f32 %v532, %v524
        %v553 = vadd.f32 %v533, %v549
        %v554 = vadd.f32 %v534, %v550
        %v555 = vadd.f32 %v535, %v551
        %v556 = vadd.f32 %v536, %v552
        %v557 = vadd.f32 %v529, 2.0
        %v558 = vadd.f32 %v530, 2.0
        %v559 = vadd.f32 %v531, 2.0
        %v560 = vadd.f32 %v532, 2.0
        %v561 = vadd.f32 %v557, %v537
        %v562 = vadd.f32 %v558, %v538
        %v563 = vadd.f32 %v559, %v539
        %v564 = vadd.f32 %v560, %v540
        %v565 = vsel %vm525, %v553, %v561
        %v566 = vsel %vm526, %v554, %v562
        %v567 = vsel %vm527, %v555, %v563
        %v568 = vsel %vm528, %v556, %v564
        %v569 = vmul.f32 %v505, %v545
        %v570 = vmul.f32 %v506, %v546
        %v571 = vmul.f32 %v507, %v547
        %v572 = vmul.f32 %v508, %v548
        %v573 = vrcp.pop %v565
        %v574 = vrcp.pop %v566
        %v575 = vrcp.pop %v567
        %v576 = vrcp.pop %v568
        %v577 = vmul.f32 %v569, %v573
        %v578 = vmul.f32 %v570, %v574
        %v579 = vmul.f32 %v571, %v575
        %v580 = vmul.f32 %v572, %v576
        %v581 = vpack.c.bf16 %v578, %v577
        %v582 = vpack.c.bf16 %v580, %v579
        %v585 = vunpack.c.l.b16 %v581
        %v586 = vunpack.c.h.b16 %v581
        %v587 = vunpack.c.l.b16 %v582
        %v588 = vunpack.c.h.b16 %v582
        %v589 = vpack.c.b16 %v585, %v585
        %v590 = vpack.c.b16 %v586, %v586
        %v591 = vpack.c.b16 %v587, %v587
        %v592 = vpack.c.b16 %v588, %v588
        %vm597 = vcmask 257024
        %598 = vst.msk [vmem:[%s221] sm:$0xf] %vm597, %v589
        %599 = vst.msk [vmem:[%s221 + $0x4] sm:$0xf] %vm597, %v590
        %600 = vst.msk [vmem:[%s221 + $0x8] sm:$0xf] %vm597, %v591
        %601 = vst.msk [vmem:[%s221 + $0xc] sm:$0xf] %vm597, %v592
        %vm602 = vcmask 261120
        %v603 = vsel %vm602, %v577, 0.0
        %v604 = vsel %vm602, %v578, 0.0
        %v605 = vadd.f32 %v603, %v604
        %v606 = vsel %vm602, %v579, 0.0
        %v607 = vadd.f32 %v605, %v606
        %v608 = vsel %vm602, %v580, 0.0
        %v609 = vadd.f32 %v607, %v608
        %v610 = vrot.slane %v609, 4
        %v611 = vadd.f32 %v609, %v610
        %v612 = vrot.slane %v611, 2
        %v613 = vadd.f32 %v611, %v612
        %v614 = vrot.slane %v613, 1
        %v615 = vadd.f32 %v613, %v614
        %v616 = vmul.f32 %v577, %v577
        %v617 = vmul.f32 %v578, %v578
        %v618 = vmul.f32 %v579, %v579
        %v619 = vmul.f32 %v580, %v580
        %v620 = vsel %vm602, %v616, 0.0
        %v621 = vsel %vm602, %v617, 0.0
        %v622 = vadd.f32 %v620, %v621
        %v623 = vsel %vm602, %v618, 0.0
        %v624 = vadd.f32 %v622, %v623
        %v625 = vsel %vm602, %v619, 0.0
        %v626 = vadd.f32 %v624, %v625
        %v627 = vrot.slane %v626, 4
        %v628 = vadd.f32 %v626, %v627
        %v629 = vrot.slane %v628, 2
        %v630 = vadd.f32 %v628, %v629
        %v631 = vrot.slane %v630, 1
        %v632 = vadd.f32 %v630, %v631
        %v633 = vsel %vm321, %v615, %v632
        %vm634 = vcmask 254976
        %635 = vst.msk [vmem:[%s228] sm:$0x3] %vm634, %v633
        %s636 = sand.u32 %s120, 1
        %s637 = scalar_lea.sflag [#allocation4], %s636
        %s638 = sand.u32 %s120, 1
        %s639 = smul.addr %s638, 16
        %s640 = scalar_lea.vmem [#allocation3], %s639
        %s641 = sand.u32 %s146, 1
        %s642 = scalar_lea.sflag [#allocation6], %s641
        %s643 = sand.u32 %s146, 1
        %s644 = smul.addr %s643, 2
        %s645 = scalar_lea.vmem [#allocation5], %s644
        // Predicated region
        $region37: #{tpu_custom_call.1} parent=35 // pred_check
          %p646 = pneg %p130
        $region38: #{tpu_custom_call.1} parent=35 // pred_check_branch
          %648 = sbr.rel (%p646) target = $region40
        $region39: #{tpu_custom_call.1} parent=35 // pred_region
          %s650 = ssub.s32 256, 256
          %651 = vsyncadd %s637, %s650
          %s652 = smul.addr %s23, 4
          %s653 = smul.addr %s652, 64
          %s654 = scalar_lea.hbm %s4, %s653
          %s655 = sshll.u32 %s640, 4
          %s656 = int_to_ptr.vmem [resolvable:$true] %s655
          %661 = dma.vmem_to_hbm [thread:$0]  %s656, 256, %s654, %s637, 64, 64, 4
        $region40: #{tpu_custom_call.1} parent=35 // pred_fallthru
          _
        // Predicated region
        $region41: #{tpu_custom_call.1} parent=35 // pred_check
          %p662 = pneg %p156
        $region42: #{tpu_custom_call.1} parent=35 // pred_check_branch
          %664 = sbr.rel (%p662) target = $region44
        $region43: #{tpu_custom_call.1} parent=35 // pred_region
          %s666 = ssub.s32 32, 32
          %667 = vsyncadd %s642, %s666
          %s668 = smul.addr %s23, 32
          %s669 = scalar_lea.hbm %s5, %s668
          %s671 = sshll.u32 %s645, 4
          %s672 = int_to_ptr.vmem [resolvable:$true] %s671
          %674 = dma.vmem_to_hbm [thread:$0]  %s672, 32, %s669, %s642
        $region44: #{tpu_custom_call.1} parent=35 // pred_fallthru
          _
      $region36: #{tpu_custom_call.1} parent=5 // pred_fallthru
        _
      %p675 = scmp.le.s32.totalorder 2, %s18
      // Predicated region
      $region45: #{tpu_custom_call.1} parent=5 // pred_check
        %p676 = pneg %p675
      $region46: #{tpu_custom_call.1} parent=5 // pred_check_branch
        %678 = sbr.rel (%p676) target = $region48
      $region47: #{tpu_custom_call.1} parent=5 // pred_region
        %s679 = ssub.s32 %s18, 2
        // Predicated region
        $region49: #{tpu_custom_call.1} parent=47 // pred_check
          %p680 = pneg %p136
        $region50: #{tpu_custom_call.1} parent=47 // pred_check_branch
          %682 = sbr.rel (%p680) target = $region52
        $region51: #{tpu_custom_call.1} parent=47 // pred_region
          %s683 = sand.u32 %s121, 1
          %s684 = scalar_lea.sflag [#allocation4], %s683
          %s685 = sand.u32 %s121, 1
          %s686 = smul.addr %s685, 16
          %s687 = scalar_lea.vmem [#allocation3], %s686
          %688 = dma.done %s684, 256
        $region52: #{tpu_custom_call.1} parent=47 // pred_fallthru
          _
        // Predicated region
        $region53: #{tpu_custom_call.1} parent=47 // pred_check
          %p689 = pneg %p162
        $region54: #{tpu_custom_call.1} parent=47 // pred_check_branch
          %691 = sbr.rel (%p689) target = $region56
        $region55: #{tpu_custom_call.1} parent=47 // pred_region
          %s692 = sand.u32 %s147, 1
          %s693 = scalar_lea.sflag [#allocation6], %s692
          %s694 = sand.u32 %s147, 1
          %s695 = smul.addr %s694, 2
          %s696 = scalar_lea.vmem [#allocation5], %s695
          %697 = dma.done %s693, 32
        $region56: #{tpu_custom_call.1} parent=47 // pred_fallthru
          _
      $region48: #{tpu_custom_call.1} parent=5 // pred_fallthru
        _
    $region6: #{tpu_custom_call.1} parent=1 // loop_footer
      %s22 = sadd.s32 1, %s18
    $region7: #{tpu_custom_call.1} parent=1 // loop_footer_branch
      %17 = sbr.rel target = $region3
    $region8: #{tpu_custom_call.1} parent=1 // loop_exit
      _
    %698 = vsyncpa [#allocation4], 1
    %s699 = scalar_lea.sflag [#allocation4], 1
    %700 = vsyncpa %s699, 1
    %701 = vsyncpa [#allocation6], 1
    %s702 = scalar_lea.sflag [#allocation6], 1
    %703 = vsyncpa %s702, 1

</llo_original>
